<compile_context>
chip_gen: v6e
topology: v6e:2x2x1
jax: 0.10.0
libtpu: 0.0.40
codegen_flags: <defaults>
</compile_context>

<pallas_src>
import jax
import jax.numpy as jnp
from jax.experimental import pallas as pl
from jax.experimental.pallas import tpu as pltpu


def _linear_sigmoid_kernel(x_ref, w_ref, b_ref, o_ref):
    # x_ref: (TB, F) VMEM   one batch tile per grid step (auto-pipelined DMA)
    # w_ref: (8,  F) VMEM   grid-resident; row 0 = real weight, rows 1..7 are zero
    # b_ref: (1,  1) SMEM   scalar bias
    # o_ref: (1, TB) VMEM   lane-dense output block
    z = jax.lax.dot_general(
        w_ref[...], x_ref[...],
        dimension_numbers=(((1,), (1,)), ((), ())),   # contract F of both -> (8, TB) on the MXU
        preferred_element_type=jnp.float32,
        precision=jax.lax.Precision.HIGHEST,          # keep ~f32 numerics (MXU multi-pass)
    )
    row = z[0:1, :] + b_ref[0, 0]                     # (1, TB); scalar bias from SMEM
    o_ref[...] = jax.nn.sigmoid(row).astype(o_ref.dtype)


def linear_sigmoid(x, weight, bias, *, block_batch=None,
                   vmem_bytes_per_buffer=8 * 1024 * 1024):
    """sigmoid(x @ weight.T + bias).

    x:      (B, F) float32
    weight: (1, F) float32   (PyTorch nn.Linear(F, 1).weight layout)
    bias:   (1,)   float32
    returns (B, 1) float32
    """
    B, F = x.shape

    # Weight padded to 8 rows (avoids an M=1 MXU matmul); rows 1..7 are zero and
    # only contribute to result rows we never read.
    w8 = jnp.zeros((8, F), x.dtype).at[0, :].set(jnp.reshape(weight, (F,)).astype(x.dtype))
    b = jnp.reshape(bias, (1, 1)).astype(jnp.float32)

    # ---- tile sizing by bytes (lane-padded VMEM footprint), not by a row cap ----
    lane_padded_f = (-(-F // 128)) * 128                     # VMEM lane-pads F up to 128s
    row_vmem_bytes = lane_padded_f * x.dtype.itemsize
    if block_batch is None:
        block_batch = max(8, vmem_bytes_per_buffer // row_vmem_bytes)
    block_batch = int(block_batch)
    if block_batch >= B:
        block_batch = B                                      # single tile: block == full array
    else:
        # multi-tile: keep the lane-dense output block 128-aligned
        block_batch = max(128, (block_batch // 128) * 128)
        if block_batch > B:
            block_batch = B

    n_tiles = pl.cdiv(B, block_batch)
    b_pad = n_tiles * block_batch                            # padded OUTPUT only (cheap); x is not padded

    out = pl.pallas_call(
        _linear_sigmoid_kernel,
        out_shape=jax.ShapeDtypeStruct((1, b_pad), jnp.float32),
        grid=(n_tiles,),
        in_specs=[
            pl.BlockSpec((block_batch, F), lambda i: (i, 0)),    # x: one batch tile per step
            pl.BlockSpec((8, F), lambda i: (0, 0)),              # weight slab: resident in VMEM
            pl.BlockSpec(memory_space=pltpu.MemorySpace.SMEM),   # bias: scalar in SMEM
        ],
        out_specs=pl.BlockSpec((1, block_batch), lambda i: (0, i)),  # lane-dense output blocks
        compiler_params=pltpu.CompilerParams(
            dimension_semantics=("parallel",),   # TODO(synk): try pltpu.CORE_PARALLEL on v7x
            vmem_limit_bytes=48 * 1024 * 1024,
        ),
    )(x, w8, b)

    # Slice off the (tiny) padded tail of the output and restore the (B, 1) shape.
    return out.reshape(-1)[:B].reshape(B, 1)


if __name__ == "__main__":
    key = jax.random.PRNGKey(0)
    kx, kw, kb, kx2 = jax.random.split(key, 4)

    # Small shapes consistent with Model(n_input_features): x is (batch, F).
    batch, n_input_features = 64, 32
    x = jax.random.normal(kx, (batch, n_input_features), dtype=jnp.float32)
    # PyTorch nn.Linear(F, 1) parameter shapes: weight (1, F), bias (1,)
    weight = jax.random.normal(kw, (1, n_input_features), dtype=jnp.float32) * 0.1
    bias = jax.random.normal(kb, (1,), dtype=jnp.float32) * 0.1

    def ref_fn(xx):
        # Exact-f32 reference (VPU-style sum) to be independent of XLA dot precision.
        return jax.nn.sigmoid(jnp.sum(xx * weight, axis=-1, keepdims=True) + bias)

    # 1) Default (auto tile-size, single-tile) path.
    y = linear_sigmoid(x, weight, bias)
    jax.block_until_ready(y)
    assert y.shape == (batch, 1)
    # Tolerance is slack for MXU f32 precision modes; with Precision.HIGHEST the
    # observed error is ~1e-6.
    assert jnp.allclose(y, ref_fn(x), atol=2e-3, rtol=2e-3)

    # 2) Multi-tile + ragged-last-block path (exercises the pipelined batch grid,
    #    the lane-blocked output, and the no-pad masked ragged read).
    B2 = 1000
    x2 = jax.random.normal(kx2, (B2, n_input_features), dtype=jnp.float32)
    y2 = linear_sigmoid(x2, weight, bias, block_batch=256)
    jax.block_until_ready(y2)
    assert y2.shape == (B2, 1)
    assert jnp.allclose(y2, ref_fn(x2), atol=2e-3, rtol=2e-3)

    print("KERNEL_OK")
</pallas_src>

<mosaic_0001>
module attributes {stable_mosaic.version = 11 : i64} {
  func.func @_linear_sigmoid_kernel(%arg0: i32, %arg1: memref<64x32xf32, #tpu.memory_space<vmem>>, %arg2: memref<8x32xf32, #tpu.memory_space<vmem>>, %arg3: memref<1x1xf32, #tpu.memory_space<smem>>, %arg4: memref<1x64xf32, #tpu.memory_space<vmem>>) attributes {dimension_semantics = [#tpu.dimension_semantics<parallel>], iteration_bounds = array<i64: 1>, scalar_prefetch = 0 : i64, scratch_operands = 0 : i64, tpu.core_type = #tpu.core_type<tc>, window_params = [{transform_indices = @transform_0, window_bounds = array<i64: 64, 32>}, {pipeline_mode = #tpu.pipeline_mode<synchronous>, transform_indices = @transform_1, window_bounds = array<i64: 8, 32>}, {transform_indices = @transform_2, window_bounds = array<i64: 1, 1>}, {transform_indices = @transform_3, window_bounds = array<i64: 1, 64>}]} {
    %c0 = arith.constant 0 : index
    %c0_0 = arith.constant 0 : index
    %0 = vector.load %arg2[%c0, %c0_0] : memref<8x32xf32, #tpu.memory_space<vmem>>, vector<8x32xf32>
    %c0_1 = arith.constant 0 : index
    %c0_2 = arith.constant 0 : index
    %1 = vector.load %arg1[%c0_1, %c0_2] : memref<64x32xf32, #tpu.memory_space<vmem>>, vector<64x32xf32>
    %cst = arith.constant dense<0.000000e+00> : vector<8x64xf32>
    %2 = tpu.matmul %0, %1, %cst {dimension_numbers = #tpu.dot_dimension_numbers<[1], [1], [0], [0], [0, 0, 1, 0], [], []>, precision = #tpu.contract_precision<fp32>} : vector<8x32xf32>, vector<64x32xf32>, vector<8x64xf32> -> vector<8x64xf32>
    %3 = vector.extract_strided_slice %2 {offsets = [0, 0], sizes = [1, 64], strides = [1, 1]} : vector<8x64xf32> to vector<1x64xf32>
    %c0_3 = arith.constant 0 : index
    %c0_4 = arith.constant 0 : index
    %4 = memref.load %arg3[%c0_3, %c0_4] : memref<1x1xf32, #tpu.memory_space<smem>>
    %5 = vector.broadcast %4 : f32 to vector<1x64xf32>
    %6 = arith.addf %3, %5 : vector<1x64xf32>
    %7 = arith.negf %6 : vector<1x64xf32>
    %8 = math.exp %7 : vector<1x64xf32>
    %cst_5 = arith.constant 1.000000e+00 : f32
    %9 = vector.broadcast %cst_5 : f32 to vector<1x64xf32>
    %10 = arith.addf %9, %8 : vector<1x64xf32>
    %11 = arith.divf %9, %10 : vector<1x64xf32>
    %c0_6 = arith.constant 0 : index
    %c0_7 = arith.constant 0 : index
    %12 = vector.load %arg4[%c0_6, %c0_7] : memref<1x64xf32, #tpu.memory_space<vmem>>, vector<1x64xf32>
    tpu.vector_store %arg4[%c0_6, %c0_7], %11 {strides = array<i32>} : memref<1x64xf32, #tpu.memory_space<vmem>>, vector<1x64xf32>,
    return
  }
  func.func @transform_0(%arg0: i32) -> (i32, i32) {
    %c0_i32 = arith.constant 0 : i32
    %c0_i32_0 = arith.constant 0 : i32
    return %arg0, %c0_i32 : i32, i32
  }
  func.func @transform_1(%arg0: i32) -> (i32, i32) {
    %c0_i32 = arith.constant 0 : i32
    %c0_i32_0 = arith.constant 0 : i32
    %c0_i32_1 = arith.constant 0 : i32
    return %c0_i32, %c0_i32_0 : i32, i32
  }
  func.func @transform_2(%arg0: i32) -> (i32, i32) {
    %c0_i32 = arith.constant 0 : i32
    %c0_i32_0 = arith.constant 0 : i32
    %c0_i32_1 = arith.constant 0 : i32
    return %c0_i32, %c0_i32_0 : i32, i32
  }
  func.func @transform_3(%arg0: i32) -> (i32, i32) {
    %c0_i32 = arith.constant 0 : i32
    %c0_i32_0 = arith.constant 0 : i32
    return %c0_i32, %arg0 : i32, i32
  }
}

</mosaic_0001>

<llo_original>
// kernel: tpu_custom_call.1
$region0: #{tpu_custom_call.1}
  #allocation0 [shape = 'u32[]', space=smem, size = 0x4, offset = 0x4, fixed_abs, tag = 'smem constant byte address 0x4 - core index']
  #allocation1 [shape = 'u32[144,128]{1,0:T(1,128)}', space=vmem, size = 0x12000, scoped, tag = 'internal scratch']
  #allocation2 [shape = 'f32[1,1]{1,0:T(1,128)S(6)}', space=smem, size = 0x200, scoped, tag = 'scoped memory for tpu_custom_call.1']
  %s0 = inlined_call_operand.vmem [shape: f32[64,32], index: 0, kind: input, shape index: {}]
  %s1 = inlined_call_operand.vmem [shape: f32[8,32], index: 1, kind: input, shape index: {}]
  %s2 = inlined_call_operand.<no memory space> [shape: f32[1,1], index: 2, kind: input, shape index: {}]
  %s3 = inlined_call_operand.hbm [shape: f32[1,64], index: 3, kind: output, shape index: {}]
  %s4 = sld [smem:[#allocation0]]
  $region22: #{tpu_custom_call.1} parent=0
    _
  %s6 = ssub.s32 1, %s4
  %s7 = scalar_select 0, %s6, %s4
  %8 = sst [smem:[#allocation2]] %s2
  $region1: #{tpu_custom_call.1} parent=0
    #allocation3 [shape = 'u8[512]{0}', space=vmem, size = 0x400, scoped, tag = 'output window, operand 0, single buffered']
    #allocation4 [shape = 's32[1]{0}', space=sflag, size = 0x4, scoped, tag = 'scoped memory for tpu_custom_call.1']
    %9 = vsyncpa [#allocation4], 0
    // Predicated region
    $region2: #{tpu_custom_call.1} parent=1 // pred_check
      _
    $region3: #{tpu_custom_call.1} parent=1 // pred_check_branch
      %11 = sbr.rel (0) target = $region5
    $region4: #{tpu_custom_call.1} parent=1 // pred_region
      _
    $region5: #{tpu_custom_call.1} parent=1 // pred_fallthru
      _
    // Predicated region
    $region6: #{tpu_custom_call.1} parent=1 // pred_check
      _
    $region7: #{tpu_custom_call.1} parent=1 // pred_check_branch
      %13 = sbr.rel (0) target = $region9
    $region8: #{tpu_custom_call.1} parent=1 // pred_region
      _
    $region9: #{tpu_custom_call.1} parent=1 // pred_fallthru
      _
    // Predicated region
    $region10: #{tpu_custom_call.1} parent=1 // pred_check
      _
    $region11: #{tpu_custom_call.1} parent=1 // pred_check_branch
      %15 = sbr.rel (0) target = $region13
    $region12: #{tpu_custom_call.1} parent=1 // pred_region
      _
    $region13: #{tpu_custom_call.1} parent=1 // pred_fallthru
      _
    %v16 = vld [vmem:[%s1] sm:$0xff]
    %v17 = vld [vmem:[%s0] sm:$0xff]
    %v18 = vld [vmem:[%s0 + $0x8] sm:$0xff]
    %v19 = vld [vmem:[%s0 + $0x10] sm:$0xff]
    %v20 = vld [vmem:[%s0 + $0x18] sm:$0xff]
    %v21 = vld [vmem:[%s0 + $0x20] sm:$0xff]
    %v22 = vld [vmem:[%s0 + $0x28] sm:$0xff]
    %v23 = vld [vmem:[%s0 + $0x30] sm:$0xff]
    %v24 = vld [vmem:[%s0 + $0x38] sm:$0xff]
    %vm25 = vcmask 261120
    %v27 = vsel %vm25, %v16, 0
    %v30 = vsel %vm25, %v17, 0
    %v33 = vsel %vm25, %v18, 0
    %v36 = vsel %vm25, %v19, 0
    %v39 = vsel %vm25, %v20, 0
    %v42 = vsel %vm25, %v21, 0
    %v45 = vsel %vm25, %v22, 0
    %v48 = vsel %vm25, %v23, 0
    %v51 = vsel %vm25, %v24, 0
    %53 = vmatprep.subr.mxu0 0.0
    %54 = vmatpush1.xpose.msra.mxu0 0.0
    %55 = vmatprep.subr.mxu0 0.0
    %56 = vmatpush1.xpose.msra.mxu0 0.0
    %57 = vmatprep.subr.mxu0 0.0
    %58 = vmatpush1.xpose.msra.mxu0 0.0
    %59 = vmatprep.subr.mxu0 0.0
    %60 = vmatpush1.xpose.msra.mxu0 0.0
    %61 = vmatprep.subr.mxu0 0.0
    %62 = vmatpush1.xpose.msra.mxu0 0.0
    %63 = vmatprep.subr.mxu0 0.0
    %64 = vmatpush1.xpose.msra.mxu0 0.0
    %65 = vmatprep.subr.mxu0 0.0
    %66 = vmatpush1.xpose.msra.mxu0 0.0
    %67 = vmatprep.subr.mxu0 0.0
    %68 = vmatpush1.xpose.msra.mxu0 0.0
    %69 = vmatprep.subr.mxu0 0.0
    %v70 = vand.u32 %v51, 4294901760
    %71 = vmatpush1.xpose.msra.mxu0 %v70
    %72 = vmatprep.subr.mxu0 0.0
    %v73 = vand.u32 %v48, 4294901760
    %74 = vmatpush1.xpose.msra.mxu0 %v73
    %75 = vmatprep.subr.mxu0 0.0
    %v76 = vand.u32 %v45, 4294901760
    %77 = vmatpush1.xpose.msra.mxu0 %v76
    %78 = vmatprep.subr.mxu0 0.0
    %v79 = vand.u32 %v42, 4294901760
    %80 = vmatpush1.xpose.msra.mxu0 %v79
    %81 = vmatprep.subr.mxu0 0.0
    %v82 = vand.u32 %v39, 4294901760
    %83 = vmatpush1.xpose.msra.mxu0 %v82
    %84 = vmatprep.subr.mxu0 0.0
    %v85 = vand.u32 %v36, 4294901760
    %86 = vmatpush1.xpose.msra.mxu0 %v85
    %87 = vmatprep.subr.mxu0 0.0
    %v88 = vand.u32 %v33, 4294901760
    %89 = vmatpush1.xpose.msra.mxu0 %v88
    %90 = vmatprep.subr.mxu0 0.0
    %v91 = vand.u32 %v30, 4294901760
    %92 = vmatpush1.xpose.msra.mxu0 %v91
    %93 = vmatprep.subr.mxu0 0.0
    %94 = vmatpush2.xpose.msra.mxu0 0.0
    %95 = vmatprep.subr.mxu0 0.0
    %96 = vmatpush2.xpose.msra.mxu0 0.0
    %97 = vmatprep.subr.mxu0 0.0
    %98 = vmatpush2.xpose.msra.mxu0 0.0
    %99 = vmatprep.subr.mxu0 0.0
    %100 = vmatpush2.xpose.msra.mxu0 0.0
    %101 = vmatprep.subr.mxu0 0.0
    %102 = vmatpush2.xpose.msra.mxu0 0.0
    %103 = vmatprep.subr.mxu0 0.0
    %104 = vmatpush2.xpose.msra.mxu0 0.0
    %105 = vmatprep.subr.mxu0 0.0
    %106 = vmatpush2.xpose.msra.mxu0 0.0
    %107 = vmatprep.subr.mxu0 0.0
    %108 = vmatpush2.xpose.msra.mxu0 0.0
    %109 = vmatprep.subr.mxu0 0.0
    %110 = vmatpush2.xpose.msra.mxu0 0.0
    %111 = vmatprep.subr.mxu0 0.0
    %112 = vmatpush2.xpose.msra.mxu0 0.0
    %113 = vmatprep.subr.mxu0 0.0
    %114 = vmatpush2.xpose.msra.mxu0 0.0
    %115 = vmatprep.subr.mxu0 0.0
    %116 = vmatpush2.xpose.msra.mxu0 0.0
    %117 = vmatprep.subr.mxu0 0.0
    %118 = vmatpush2.xpose.msra.mxu0 0.0
    %119 = vmatprep.subr.mxu0 0.0
    %120 = vmatpush2.xpose.msra.mxu0 0.0
    %121 = vmatprep.subr.mxu0 0.0
    %122 = vmatpush2.xpose.msra.mxu0 0.0
    %123 = vmatprep.subr.mxu0 0.0
    %124 = vmatpush2.xpose.msra.mxu0 0.0
    %125 = vmatprep.mubr.f32.mxu0 0.0
    %v126 = vand.u32 %v27, 4294901760
    %v127 = vsub.f32 %v27, %v126
    %v128 = vand.u32 %v127, 4294901760
    %v129 = vsub.f32 %v127, %v128
    %v130 = vand.u32 %v129, 4294901760
    %131 = vmatmul.mubr.f32.gmra.mxu0 %v130
    %v132 = vpop.f32.mrf.mxu0
    %v133 = vadd.f32 0.0, %v132
    %v134 = vpop.f32.mrf.mxu0
    %135 = vdwg.mxu0
    %136 = vmatprep.subr.mxu0 0.0
    %137 = vmatpush1.xpose.msra.mxu0 0.0
    %138 = vmatprep.subr.mxu0 0.0
    %139 = vmatpush1.xpose.msra.mxu0 0.0
    %140 = vmatprep.subr.mxu0 0.0
    %141 = vmatpush1.xpose.msra.mxu0 0.0
    %142 = vmatprep.subr.mxu0 0.0
    %143 = vmatpush1.xpose.msra.mxu0 0.0
    %144 = vmatprep.subr.mxu0 0.0
    %145 = vmatpush1.xpose.msra.mxu0 0.0
    %146 = vmatprep.subr.mxu0 0.0
    %147 = vmatpush1.xpose.msra.mxu0 0.0
    %148 = vmatprep.subr.mxu0 0.0
    %149 = vmatpush1.xpose.msra.mxu0 0.0
    %150 = vmatprep.subr.mxu0 0.0
    %151 = vmatpush1.xpose.msra.mxu0 0.0
    %152 = vmatprep.subr.mxu0 0.0
    %v153 = vand.u32 %v51, 4294901760
    %v154 = vsub.f32 %v51, %v153
    %v155 = vand.u32 %v154, 4294901760
    %v156 = vsub.f32 %v154, %v155
    %v157 = vand.u32 %v156, 4294901760
    %158 = vmatpush1.xpose.msra.mxu0 %v157
    %159 = vmatprep.subr.mxu0 0.0
    %v160 = vand.u32 %v48, 4294901760
    %v161 = vsub.f32 %v48, %v160
    %v162 = vand.u32 %v161, 4294901760
    %v163 = vsub.f32 %v161, %v162
    %v164 = vand.u32 %v163, 4294901760
    %165 = vmatpush1.xpose.msra.mxu0 %v164
    %166 = vmatprep.subr.mxu0 0.0
    %v167 = vand.u32 %v45, 4294901760
    %v168 = vsub.f32 %v45, %v167
    %v169 = vand.u32 %v168, 4294901760
    %v170 = vsub.f32 %v168, %v169
    %v171 = vand.u32 %v170, 4294901760
    %172 = vmatpush1.xpose.msra.mxu0 %v171
    %173 = vmatprep.subr.mxu0 0.0
    %v174 = vand.u32 %v42, 4294901760
    %v175 = vsub.f32 %v42, %v174
    %v176 = vand.u32 %v175, 4294901760
    %v177 = vsub.f32 %v175, %v176
    %v178 = vand.u32 %v177, 4294901760
    %179 = vmatpush1.xpose.msra.mxu0 %v178
    %180 = vmatprep.subr.mxu0 0.0
    %v181 = vand.u32 %v39, 4294901760
    %v182 = vsub.f32 %v39, %v181
    %v183 = vand.u32 %v182, 4294901760
    %v184 = vsub.f32 %v182, %v183
    %v185 = vand.u32 %v184, 4294901760
    %186 = vmatpush1.xpose.msra.mxu0 %v185
    %187 = vmatprep.subr.mxu0 0.0
    %v188 = vand.u32 %v36, 4294901760
    %v189 = vsub.f32 %v36, %v188
    %v190 = vand.u32 %v189, 4294901760
    %v191 = vsub.f32 %v189, %v190
    %v192 = vand.u32 %v191, 4294901760
    %193 = vmatpush1.xpose.msra.mxu0 %v192
    %194 = vmatprep.subr.mxu0 0.0
    %v195 = vand.u32 %v33, 4294901760
    %v196 = vsub.f32 %v33, %v195
    %v197 = vand.u32 %v196, 4294901760
    %v198 = vsub.f32 %v196, %v197
    %v199 = vand.u32 %v198, 4294901760
    %200 = vmatpush1.xpose.msra.mxu0 %v199
    %201 = vmatprep.subr.mxu0 0.0
    %v202 = vand.u32 %v30, 4294901760
    %v203 = vsub.f32 %v30, %v202
    %v204 = vand.u32 %v203, 4294901760
    %v205 = vsub.f32 %v203, %v204
    %v206 = vand.u32 %v205, 4294901760
    %207 = vmatpush1.xpose.msra.mxu0 %v206
    %208 = vmatprep.subr.mxu0 0.0
    %209 = vmatpush2.xpose.msra.mxu0 0.0
    %210 = vmatprep.subr.mxu0 0.0
    %211 = vmatpush2.xpose.msra.mxu0 0.0
    %212 = vmatprep.subr.mxu0 0.0
    %213 = vmatpush2.xpose.msra.mxu0 0.0
    %214 = vmatprep.subr.mxu0 0.0
    %215 = vmatpush2.xpose.msra.mxu0 0.0
    %216 = vmatprep.subr.mxu0 0.0
    %217 = vmatpush2.xpose.msra.mxu0 0.0
    %218 = vmatprep.subr.mxu0 0.0
    %219 = vmatpush2.xpose.msra.mxu0 0.0
    %220 = vmatprep.subr.mxu0 0.0
    %221 = vmatpush2.xpose.msra.mxu0 0.0
    %222 = vmatprep.subr.mxu0 0.0
    %223 = vmatpush2.xpose.msra.mxu0 0.0
    %224 = vmatprep.subr.mxu0 0.0
    %225 = vmatpush2.xpose.msra.mxu0 0.0
    %226 = vmatprep.subr.mxu0 0.0
    %227 = vmatpush2.xpose.msra.mxu0 0.0
    %228 = vmatprep.subr.mxu0 0.0
    %229 = vmatpush2.xpose.msra.mxu0 0.0
    %230 = vmatprep.subr.mxu0 0.0
    %231 = vmatpush2.xpose.msra.mxu0 0.0
    %232 = vmatprep.subr.mxu0 0.0
    %233 = vmatpush2.xpose.msra.mxu0 0.0
    %234 = vmatprep.subr.mxu0 0.0
    %235 = vmatpush2.xpose.msra.mxu0 0.0
    %236 = vmatprep.subr.mxu0 0.0
    %237 = vmatpush2.xpose.msra.mxu0 0.0
    %238 = vmatprep.subr.mxu0 0.0
    %239 = vmatpush2.xpose.msra.mxu0 0.0
    %240 = vmatprep.mubr.f32.mxu0 0.0
    %v241 = vand.u32 %v27, 4294901760
    %242 = vmatmul.mubr.f32.gmra.mxu0 %v241
    %v243 = vpop.f32.mrf.mxu0
    %v244 = vadd.f32 %v133, %v243
    %v245 = vpop.f32.mrf.mxu0
    %246 = vdwg.mxu0
    %247 = vmatprep.subr.mxu0 0.0
    %248 = vmatpush1.xpose.msra.mxu0 0.0
    %249 = vmatprep.subr.mxu0 0.0
    %250 = vmatpush1.xpose.msra.mxu0 0.0
    %251 = vmatprep.subr.mxu0 0.0
    %252 = vmatpush1.xpose.msra.mxu0 0.0
    %253 = vmatprep.subr.mxu0 0.0
    %254 = vmatpush1.xpose.msra.mxu0 0.0
    %255 = vmatprep.subr.mxu0 0.0
    %256 = vmatpush1.xpose.msra.mxu0 0.0
    %257 = vmatprep.subr.mxu0 0.0
    %258 = vmatpush1.xpose.msra.mxu0 0.0
    %259 = vmatprep.subr.mxu0 0.0
    %260 = vmatpush1.xpose.msra.mxu0 0.0
    %261 = vmatprep.subr.mxu0 0.0
    %262 = vmatpush1.xpose.msra.mxu0 0.0
    %263 = vmatprep.subr.mxu0 0.0
    %v264 = vand.u32 %v51, 4294901760
    %v265 = vsub.f32 %v51, %v264
    %266 = vmatpush1.xpose.msra.mxu0 %v265
    %267 = vmatprep.subr.mxu0 0.0
    %v268 = vand.u32 %v48, 4294901760
    %v269 = vsub.f32 %v48, %v268
    %270 = vmatpush1.xpose.msra.mxu0 %v269
    %271 = vmatprep.subr.mxu0 0.0
    %v272 = vand.u32 %v45, 4294901760
    %v273 = vsub.f32 %v45, %v272
    %274 = vmatpush1.xpose.msra.mxu0 %v273
    %275 = vmatprep.subr.mxu0 0.0
    %v276 = vand.u32 %v42, 4294901760
    %v277 = vsub.f32 %v42, %v276
    %278 = vmatpush1.xpose.msra.mxu0 %v277
    %279 = vmatprep.subr.mxu0 0.0
    %v280 = vand.u32 %v39, 4294901760
    %v281 = vsub.f32 %v39, %v280
    %282 = vmatpush1.xpose.msra.mxu0 %v281
    %283 = vmatprep.subr.mxu0 0.0
    %v284 = vand.u32 %v36, 4294901760
    %v285 = vsub.f32 %v36, %v284
    %286 = vmatpush1.xpose.msra.mxu0 %v285
    %287 = vmatprep.subr.mxu0 0.0
    %v288 = vand.u32 %v33, 4294901760
    %v289 = vsub.f32 %v33, %v288
    %290 = vmatpush1.xpose.msra.mxu0 %v289
    %291 = vmatprep.subr.mxu0 0.0
    %v292 = vand.u32 %v30, 4294901760
    %v293 = vsub.f32 %v30, %v292
    %294 = vmatpush1.xpose.msra.mxu0 %v293
    %295 = vmatprep.subr.mxu0 0.0
    %296 = vmatpush2.xpose.msra.mxu0 0.0
    %297 = vmatprep.subr.mxu0 0.0
    %298 = vmatpush2.xpose.msra.mxu0 0.0
    %299 = vmatprep.subr.mxu0 0.0
    %300 = vmatpush2.xpose.msra.mxu0 0.0
    %301 = vmatprep.subr.mxu0 0.0
    %302 = vmatpush2.xpose.msra.mxu0 0.0
    %303 = vmatprep.subr.mxu0 0.0
    %304 = vmatpush2.xpose.msra.mxu0 0.0
    %305 = vmatprep.subr.mxu0 0.0
    %306 = vmatpush2.xpose.msra.mxu0 0.0
    %307 = vmatprep.subr.mxu0 0.0
    %308 = vmatpush2.xpose.msra.mxu0 0.0
    %309 = vmatprep.subr.mxu0 0.0
    %310 = vmatpush2.xpose.msra.mxu0 0.0
    %311 = vmatprep.subr.mxu0 0.0
    %312 = vmatpush2.xpose.msra.mxu0 0.0
    %313 = vmatprep.subr.mxu0 0.0
    %314 = vmatpush2.xpose.msra.mxu0 0.0
    %315 = vmatprep.subr.mxu0 0.0
    %316 = vmatpush2.xpose.msra.mxu0 0.0
    %317 = vmatprep.subr.mxu0 0.0
    %318 = vmatpush2.xpose.msra.mxu0 0.0
    %319 = vmatprep.subr.mxu0 0.0
    %320 = vmatpush2.xpose.msra.mxu0 0.0
    %321 = vmatprep.subr.mxu0 0.0
    %322 = vmatpush2.xpose.msra.mxu0 0.0
    %323 = vmatprep.subr.mxu0 0.0
    %324 = vmatpush2.xpose.msra.mxu0 0.0
    %325 = vmatprep.subr.mxu0 0.0
    %326 = vmatpush2.xpose.msra.mxu0 0.0
    %327 = vmatprep.mubr.f32.mxu0 0.0
    %v328 = vand.u32 %v27, 4294901760
    %v329 = vsub.f32 %v27, %v328
    %330 = vmatmul.mubr.f32.gmra.mxu0 %v329
    %v331 = vpop.f32.mrf.mxu0
    %v332 = vadd.f32 %v244, %v331
    %v333 = vpop.f32.mrf.mxu0
    %334 = vdwg.mxu0
    %335 = vmatprep.subr.mxu0 0.0
    %336 = vmatpush1.xpose.msra.mxu0 0.0
    %337 = vmatprep.subr.mxu0 0.0
    %338 = vmatpush1.xpose.msra.mxu0 0.0
    %339 = vmatprep.subr.mxu0 0.0
    %340 = vmatpush1.xpose.msra.mxu0 0.0
    %341 = vmatprep.subr.mxu0 0.0
    %342 = vmatpush1.xpose.msra.mxu0 0.0
    %343 = vmatprep.subr.mxu0 0.0
    %344 = vmatpush1.xpose.msra.mxu0 0.0
    %345 = vmatprep.subr.mxu0 0.0
    %346 = vmatpush1.xpose.msra.mxu0 0.0
    %347 = vmatprep.subr.mxu0 0.0
    %348 = vmatpush1.xpose.msra.mxu0 0.0
    %349 = vmatprep.subr.mxu0 0.0
    %350 = vmatpush1.xpose.msra.mxu0 0.0
    %351 = vmatprep.subr.mxu0 0.0
    %v352 = vand.u32 %v51, 4294901760
    %353 = vmatpush1.xpose.msra.mxu0 %v352
    %354 = vmatprep.subr.mxu0 0.0
    %v355 = vand.u32 %v48, 4294901760
    %356 = vmatpush1.xpose.msra.mxu0 %v355
    %357 = vmatprep.subr.mxu0 0.0
    %v358 = vand.u32 %v45, 4294901760
    %359 = vmatpush1.xpose.msra.mxu0 %v358
    %360 = vmatprep.subr.mxu0 0.0
    %v361 = vand.u32 %v42, 4294901760
    %362 = vmatpush1.xpose.msra.mxu0 %v361
    %363 = vmatprep.subr.mxu0 0.0
    %v364 = vand.u32 %v39, 4294901760
    %365 = vmatpush1.xpose.msra.mxu0 %v364
    %366 = vmatprep.subr.mxu0 0.0
    %v367 = vand.u32 %v36, 4294901760
    %368 = vmatpush1.xpose.msra.mxu0 %v367
    %369 = vmatprep.subr.mxu0 0.0
    %v370 = vand.u32 %v33, 4294901760
    %371 = vmatpush1.xpose.msra.mxu0 %v370
    %372 = vmatprep.subr.mxu0 0.0
    %v373 = vand.u32 %v30, 4294901760
    %374 = vmatpush1.xpose.msra.mxu0 %v373
    %375 = vmatprep.subr.mxu0 0.0
    %376 = vmatpush2.xpose.msra.mxu0 0.0
    %377 = vmatprep.subr.mxu0 0.0
    %378 = vmatpush2.xpose.msra.mxu0 0.0
    %379 = vmatprep.subr.mxu0 0.0
    %380 = vmatpush2.xpose.msra.mxu0 0.0
    %381 = vmatprep.subr.mxu0 0.0
    %382 = vmatpush2.xpose.msra.mxu0 0.0
    %383 = vmatprep.subr.mxu0 0.0
    %384 = vmatpush2.xpose.msra.mxu0 0.0
    %385 = vmatprep.subr.mxu0 0.0
    %386 = vmatpush2.xpose.msra.mxu0 0.0
    %387 = vmatprep.subr.mxu0 0.0
    %388 = vmatpush2.xpose.msra.mxu0 0.0
    %389 = vmatprep.subr.mxu0 0.0
    %390 = vmatpush2.xpose.msra.mxu0 0.0
    %391 = vmatprep.subr.mxu0 0.0
    %392 = vmatpush2.xpose.msra.mxu0 0.0
    %393 = vmatprep.subr.mxu0 0.0
    %394 = vmatpush2.xpose.msra.mxu0 0.0
    %395 = vmatprep.subr.mxu0 0.0
    %396 = vmatpush2.xpose.msra.mxu0 0.0
    %397 = vmatprep.subr.mxu0 0.0
    %398 = vmatpush2.xpose.msra.mxu0 0.0
    %399 = vmatprep.subr.mxu0 0.0
    %400 = vmatpush2.xpose.msra.mxu0 0.0
    %401 = vmatprep.subr.mxu0 0.0
    %402 = vmatpush2.xpose.msra.mxu0 0.0
    %403 = vmatprep.subr.mxu0 0.0
    %404 = vmatpush2.xpose.msra.mxu0 0.0
    %405 = vmatprep.subr.mxu0 0.0
    %406 = vmatpush2.xpose.msra.mxu0 0.0
    %407 = vmatprep.mubr.f32.mxu0 0.0
    %v408 = vand.u32 %v27, 4294901760
    %v409 = vsub.f32 %v27, %v408
    %v410 = vand.u32 %v409, 4294901760
    %411 = vmatmul.mubr.f32.gmra.mxu0 %v410
    %v412 = vpop.f32.mrf.mxu0
    %v413 = vadd.f32 %v332, %v412
    %v414 = vpop.f32.mrf.mxu0
    %415 = vdwg.mxu0
    %416 = vmatprep.subr.mxu0 0.0
    %417 = vmatpush1.xpose.msra.mxu0 0.0
    %418 = vmatprep.subr.mxu0 0.0
    %419 = vmatpush1.xpose.msra.mxu0 0.0
    %420 = vmatprep.subr.mxu0 0.0
    %421 = vmatpush1.xpose.msra.mxu0 0.0
    %422 = vmatprep.subr.mxu0 0.0
    %423 = vmatpush1.xpose.msra.mxu0 0.0
    %424 = vmatprep.subr.mxu0 0.0
    %425 = vmatpush1.xpose.msra.mxu0 0.0
    %426 = vmatprep.subr.mxu0 0.0
    %427 = vmatpush1.xpose.msra.mxu0 0.0
    %428 = vmatprep.subr.mxu0 0.0
    %429 = vmatpush1.xpose.msra.mxu0 0.0
    %430 = vmatprep.subr.mxu0 0.0
    %431 = vmatpush1.xpose.msra.mxu0 0.0
    %432 = vmatprep.subr.mxu0 0.0
    %v433 = vand.u32 %v51, 4294901760
    %v434 = vsub.f32 %v51, %v433
    %v435 = vand.u32 %v434, 4294901760
    %436 = vmatpush1.xpose.msra.mxu0 %v435
    %437 = vmatprep.subr.mxu0 0.0
    %v438 = vand.u32 %v48, 4294901760
    %v439 = vsub.f32 %v48, %v438
    %v440 = vand.u32 %v439, 4294901760
    %441 = vmatpush1.xpose.msra.mxu0 %v440
    %442 = vmatprep.subr.mxu0 0.0
    %v443 = vand.u32 %v45, 4294901760
    %v444 = vsub.f32 %v45, %v443
    %v445 = vand.u32 %v444, 4294901760
    %446 = vmatpush1.xpose.msra.mxu0 %v445
    %447 = vmatprep.subr.mxu0 0.0
    %v448 = vand.u32 %v42, 4294901760
    %v449 = vsub.f32 %v42, %v448
    %v450 = vand.u32 %v449, 4294901760
    %451 = vmatpush1.xpose.msra.mxu0 %v450
    %452 = vmatprep.subr.mxu0 0.0
    %v453 = vand.u32 %v39, 4294901760
    %v454 = vsub.f32 %v39, %v453
    %v455 = vand.u32 %v454, 4294901760
    %456 = vmatpush1.xpose.msra.mxu0 %v455
    %457 = vmatprep.subr.mxu0 0.0
    %v458 = vand.u32 %v36, 4294901760
    %v459 = vsub.f32 %v36, %v458
    %v460 = vand.u32 %v459, 4294901760
    %461 = vmatpush1.xpose.msra.mxu0 %v460
    %462 = vmatprep.subr.mxu0 0.0
    %v463 = vand.u32 %v33, 4294901760
    %v464 = vsub.f32 %v33, %v463
    %v465 = vand.u32 %v464, 4294901760
    %466 = vmatpush1.xpose.msra.mxu0 %v465
    %467 = vmatprep.subr.mxu0 0.0
    %v468 = vand.u32 %v30, 4294901760
    %v469 = vsub.f32 %v30, %v468
    %v470 = vand.u32 %v469, 4294901760
    %471 = vmatpush1.xpose.msra.mxu0 %v470
    %472 = vmatprep.subr.mxu0 0.0
    %473 = vmatpush2.xpose.msra.mxu0 0.0
    %474 = vmatprep.subr.mxu0 0.0
    %475 = vmatpush2.xpose.msra.mxu0 0.0
    %476 = vmatprep.subr.mxu0 0.0
    %477 = vmatpush2.xpose.msra.mxu0 0.0
    %478 = vmatprep.subr.mxu0 0.0
    %479 = vmatpush2.xpose.msra.mxu0 0.0
    %480 = vmatprep.subr.mxu0 0.0
    %481 = vmatpush2.xpose.msra.mxu0 0.0
    %482 = vmatprep.subr.mxu0 0.0
    %483 = vmatpush2.xpose.msra.mxu0 0.0
    %484 = vmatprep.subr.mxu0 0.0
    %485 = vmatpush2.xpose.msra.mxu0 0.0
    %486 = vmatprep.subr.mxu0 0.0
    %487 = vmatpush2.xpose.msra.mxu0 0.0
    %488 = vmatprep.subr.mxu0 0.0
    %489 = vmatpush2.xpose.msra.mxu0 0.0
    %490 = vmatprep.subr.mxu0 0.0
    %491 = vmatpush2.xpose.msra.mxu0 0.0
    %492 = vmatprep.subr.mxu0 0.0
    %493 = vmatpush2.xpose.msra.mxu0 0.0
    %494 = vmatprep.subr.mxu0 0.0
    %495 = vmatpush2.xpose.msra.mxu0 0.0
    %496 = vmatprep.subr.mxu0 0.0
    %497 = vmatpush2.xpose.msra.mxu0 0.0
    %498 = vmatprep.subr.mxu0 0.0
    %499 = vmatpush2.xpose.msra.mxu0 0.0
    %500 = vmatprep.subr.mxu0 0.0
    %501 = vmatpush2.xpose.msra.mxu0 0.0
    %502 = vmatprep.subr.mxu0 0.0
    %503 = vmatpush2.xpose.msra.mxu0 0.0
    %504 = vmatprep.mubr.f32.mxu0 0.0
    %v505 = vand.u32 %v27, 4294901760
    %506 = vmatmul.mubr.f32.gmra.mxu0 %v505
    %v507 = vpop.f32.mrf.mxu0
    %v508 = vadd.f32 %v413, %v507
    %v509 = vpop.f32.mrf.mxu0
    %510 = vdwg.mxu0
    %511 = vmatprep.subr.mxu0 0.0
    %512 = vmatpush1.xpose.msra.mxu0 0.0
    %513 = vmatprep.subr.mxu0 0.0
    %514 = vmatpush1.xpose.msra.mxu0 0.0
    %515 = vmatprep.subr.mxu0 0.0
    %516 = vmatpush1.xpose.msra.mxu0 0.0
    %517 = vmatprep.subr.mxu0 0.0
    %518 = vmatpush1.xpose.msra.mxu0 0.0
    %519 = vmatprep.subr.mxu0 0.0
    %520 = vmatpush1.xpose.msra.mxu0 0.0
    %521 = vmatprep.subr.mxu0 0.0
    %522 = vmatpush1.xpose.msra.mxu0 0.0
    %523 = vmatprep.subr.mxu0 0.0
    %524 = vmatpush1.xpose.msra.mxu0 0.0
    %525 = vmatprep.subr.mxu0 0.0
    %526 = vmatpush1.xpose.msra.mxu0 0.0
    %527 = vmatprep.subr.mxu0 0.0
    %v528 = vand.u32 %v51, 4294901760
    %529 = vmatpush1.xpose.msra.mxu0 %v528
    %530 = vmatprep.subr.mxu0 0.0
    %v531 = vand.u32 %v48, 4294901760
    %532 = vmatpush1.xpose.msra.mxu0 %v531
    %533 = vmatprep.subr.mxu0 0.0
    %v534 = vand.u32 %v45, 4294901760
    %535 = vmatpush1.xpose.msra.mxu0 %v534
    %536 = vmatprep.subr.mxu0 0.0
    %v537 = vand.u32 %v42, 4294901760
    %538 = vmatpush1.xpose.msra.mxu0 %v537
    %539 = vmatprep.subr.mxu0 0.0
    %v540 = vand.u32 %v39, 4294901760
    %541 = vmatpush1.xpose.msra.mxu0 %v540
    %542 = vmatprep.subr.mxu0 0.0
    %v543 = vand.u32 %v36, 4294901760
    %544 = vmatpush1.xpose.msra.mxu0 %v543
    %545 = vmatprep.subr.mxu0 0.0
    %v546 = vand.u32 %v33, 4294901760
    %547 = vmatpush1.xpose.msra.mxu0 %v546
    %548 = vmatprep.subr.mxu0 0.0
    %v549 = vand.u32 %v30, 4294901760
    %550 = vmatpush1.xpose.msra.mxu0 %v549
    %551 = vmatprep.subr.mxu0 0.0
    %552 = vmatpush2.xpose.msra.mxu0 0.0
    %553 = vmatprep.subr.mxu0 0.0
    %554 = vmatpush2.xpose.msra.mxu0 0.0
    %555 = vmatprep.subr.mxu0 0.0
    %556 = vmatpush2.xpose.msra.mxu0 0.0
    %557 = vmatprep.subr.mxu0 0.0
    %558 = vmatpush2.xpose.msra.mxu0 0.0
    %559 = vmatprep.subr.mxu0 0.0
    %560 = vmatpush2.xpose.msra.mxu0 0.0
    %561 = vmatprep.subr.mxu0 0.0
    %562 = vmatpush2.xpose.msra.mxu0 0.0
    %563 = vmatprep.subr.mxu0 0.0
    %564 = vmatpush2.xpose.msra.mxu0 0.0
    %565 = vmatprep.subr.mxu0 0.0
    %566 = vmatpush2.xpose.msra.mxu0 0.0
    %567 = vmatprep.subr.mxu0 0.0
    %568 = vmatpush2.xpose.msra.mxu0 0.0
    %569 = vmatprep.subr.mxu0 0.0
    %570 = vmatpush2.xpose.msra.mxu0 0.0
    %571 = vmatprep.subr.mxu0 0.0
    %572 = vmatpush2.xpose.msra.mxu0 0.0
    %573 = vmatprep.subr.mxu0 0.0
    %574 = vmatpush2.xpose.msra.mxu0 0.0
    %575 = vmatprep.subr.mxu0 0.0
    %576 = vmatpush2.xpose.msra.mxu0 0.0
    %577 = vmatprep.subr.mxu0 0.0
    %578 = vmatpush2.xpose.msra.mxu0 0.0
    %579 = vmatprep.subr.mxu0 0.0
    %580 = vmatpush2.xpose.msra.mxu0 0.0
    %581 = vmatprep.subr.mxu0 0.0
    %582 = vmatpush2.xpose.msra.mxu0 0.0
    %583 = vmatprep.mubr.f32.mxu0 0.0
    %v584 = vand.u32 %v27, 4294901760
    %585 = vmatmul.mubr.f32.gmra.mxu0 %v584
    %v586 = vpop.f32.mrf.mxu0
    %v587 = vadd.f32 %v508, %v586
    %v588 = vpop.f32.mrf.mxu0
    %589 = vdwg.mxu0
    %s590 = sld [smem:[#allocation2]]
    %v591 = vstv %s590
    %v592 = vadd.f32 %v587, %v591
    %v593 = vxor.u32 %v592, 2147483648
    %v594 = vmul.f32 %v593, 1.442695
    %v595 = vpow.pop %v594
    %v596 = vadd.f32 %v595, 1.0
    %v597 = vrcp.pop %v596
    %v598 = vmul.f32 1.0, %v597
    %vm599 = vcmask 516096
    %600 = vst.msk [vmem:[#allocation3] sm:$0x1] %vm599, %v598
    // Predicated region
    $region14: #{tpu_custom_call.1} parent=1 // pred_check
      _
    $region15: #{tpu_custom_call.1} parent=1 // pred_check_branch
      %602 = sbr.rel (0) target = $region17
    $region16: #{tpu_custom_call.1} parent=1 // pred_region
      %s604 = ssub.s32 16, 16
      %605 = vsyncadd [#allocation4], %s604
      %s607 = sshll.u32 [#allocation3], 4
      %s608 = int_to_ptr.vmem [resolvable:$true] %s607
      %610 = dma.vmem_to_hbm [thread:$0]  %s608, 16, %s3, [#allocation4]
    $region17: #{tpu_custom_call.1} parent=1 // pred_fallthru
      _
    // Predicated region
    $region18: #{tpu_custom_call.1} parent=1 // pred_check
      _
    $region19: #{tpu_custom_call.1} parent=1 // pred_check_branch
      %612 = sbr.rel (0) target = $region21
    $region20: #{tpu_custom_call.1} parent=1 // pred_region
      %613 = dma.done [#allocation4], 16
    $region21: #{tpu_custom_call.1} parent=1 // pred_fallthru
      _
    %614 = vsyncpa [#allocation4], 1

</llo_original>
